<compile_context>
chip_gen: v7x
topology: tpu7x:2x2x1
jax: 0.10.0
libtpu: 0.0.40
codegen_flags: <defaults>
</compile_context>

<pallas_src>
import math
import functools

import jax
import jax.numpy as jnp
from jax import lax
from jax.experimental import pallas as pl
from jax.experimental.pallas import tpu as pltpu

_VMEM_SPEC = pl.BlockSpec(memory_space=pltpu.MemorySpace.VMEM)


def _round_up(x, m):
    return ((x + m - 1) // m) * m


def _vmem_budget_bytes():
    """Per-generation VMEM limit: ~48 MiB on v7x (64 MiB physical), ~100 MiB on v5e/v6e."""
    cap = 64 * 1024 * 1024
    try:
        cap = int(getattr(pltpu.get_tpu_info(), "vmem_capacity_bytes", cap))
    except Exception:
        pass
    return max(32 * 1024 * 1024, min(cap - 16 * 1024 * 1024, 100 * 1024 * 1024))


# =============================== fused k-means =================================
def _kmeans_kernel(feat_ref, cent0_ref, cent_out_ref, assign_ref,
                   cent_sc, cnorm_sc, sum_sc, cnt_sc,
                   *, n_valid, bn, d, k, max_iters, ragged):
    """grid = (max_iters, n_blocks); feat_ref is a [bn, d] row block.
    cent_sc  : [k, d] scratch = -2 * centroids (pre-baked for the distance matmul)
    cnorm_sc : [k, 1] scratch = ||centroid||^2
    sum_sc   : [k, d] scratch = per-cluster feature sums
    cnt_sc   : [k, 1] scratch = per-cluster counts
    """
    it = pl.program_id(0)
    nb = pl.program_id(1)
    n_blocks = pl.num_programs(1)

    # one-time init of the resident centroid scratch
    @pl.when(jnp.logical_and(it == 0, nb == 0))
    def _():
        c0 = cent0_ref[...].astype(jnp.float32)
        cent_sc[...] = -2.0 * c0
        cnorm_sc[...] = jnp.sum(c0 * c0, axis=-1, keepdims=True)

    # zero (sums, counts) at the start of every sweep over N
    @pl.when(nb == 0)
    def _():
        sum_sc[...] = jnp.zeros_like(sum_sc)
        cnt_sc[...] = jnp.zeros_like(cnt_sc)

    f = feat_ref[...].astype(jnp.float32)                              # [bn, d]
    if ragged:
        # last block reads past N: zero those rows so 0*garbage cannot NaN the sums matmul
        rowpos = lax.broadcasted_iota(jnp.int32, (bn, 1), 0) + nb * bn
        f = jnp.where(rowpos < n_valid, f, 0.0)

    # d2t[j, n] = ||c_j||^2 - 2 c_j . f_n  (same argmin over j as euclidean cdist)
    d2t = cnorm_sc[...] + lax.dot_general(
        cent_sc[...], f, (((1,), (1,)), ((), ())),
        preferred_element_type=jnp.float32)                            # [k, bn]

    dmin = jnp.min(d2t, axis=0, keepdims=True)                         # [1, bn]
    row = lax.broadcasted_iota(jnp.int32, (k, bn), 0)
    # first index achieving the minimum (matches torch.argmin tie-break)
    idx_f = jnp.min(jnp.where(d2t == dmin, row.astype(jnp.float32), float(k)),
                    axis=0, keepdims=True)                             # [1, bn]
    idx = idx_f.astype(jnp.int32)                                      # [1, bn]

    onehot = (row == idx).astype(jnp.float32)                          # [k, bn]
    if ragged:
        lanepos = lax.broadcasted_iota(jnp.int32, (1, bn), 1) + nb * bn
        onehot = onehot * (lanepos < n_valid).astype(jnp.float32)

    # canonical MXU contraction (last dim of LHS x first dim of RHS), no transpose
    sum_sc[...] += lax.dot_general(onehot, f, (((1,), (0,)), ((), ())),
                                   preferred_element_type=jnp.float32)  # [k, d]
    cnt_sc[...] += jnp.sum(onehot, axis=1, keepdims=True)              # [k, 1]

    # lane-dense assignment store; the final sweep overwrites earlier iterations
    assign_ref[...] = idx

    # end of sweep: centroid update (empty clusters keep their old centroid)
    @pl.when(nb == n_blocks - 1)
    def _():
        old = cent_sc[...] * (-0.5)
        cnt = cnt_sc[...]
        new_c = jnp.where(cnt > 0.0, sum_sc[...] / jnp.maximum(cnt, 1.0), old)
        cent_sc[...] = -2.0 * new_c
        cnorm_sc[...] = jnp.sum(new_c * new_c, axis=-1, keepdims=True)

    @pl.when(jnp.logical_and(it == max_iters - 1, nb == n_blocks - 1))
    def _():
        cent_out_ref[...] = cent_sc[...] * (-0.5)


@functools.lru_cache(maxsize=None)
def _build_kmeans(n, d, k, bn, n_blocks, max_iters, vmem_limit):
    ragged = (n_blocks * bn != n)
    kern = functools.partial(_kmeans_kernel, n_valid=n, bn=bn, d=d, k=k,
                             max_iters=max_iters, ragged=ragged)
    pc = pl.pallas_call(
        kern,
        out_shape=(jax.ShapeDtypeStruct((k, d), jnp.float32),
                   jax.ShapeDtypeStruct((1, n_blocks * bn), jnp.int32)),
        grid_spec=pltpu.PrefetchScalarGridSpec(
            num_scalar_prefetch=0,
            grid=(max_iters, n_blocks),
            in_specs=[pl.BlockSpec((bn, d), lambda it, nb: (nb, 0)),
                      pl.BlockSpec((k, d), lambda it, nb: (0, 0))],
            out_specs=(pl.BlockSpec((k, d), lambda it, nb: (0, 0)),
                       pl.BlockSpec((1, bn), lambda it, nb: (0, nb))),
            scratch_shapes=[pltpu.VMEM((k, d), jnp.float32),   # -2 * centroids
                            pltpu.VMEM((k, 1), jnp.float32),   # ||centroid||^2
                            pltpu.VMEM((k, d), jnp.float32),   # per-cluster sums
                            pltpu.VMEM((k, 1), jnp.float32)]), # per-cluster counts
        compiler_params=pltpu.CompilerParams(
            # centroid/accumulator scratch carries across both axes -> strictly sequential
            # TODO(synk): v7x could shard the nb-sweep across its two TensorCores with
            # per-core accumulators + cross-core reduce; single-core kept for portability.
            dimension_semantics=("arbitrary", "arbitrary"),
            vmem_limit_bytes=vmem_limit),
    )
    return jax.jit(pc)


def _pick_block_n(n, d, k, budget):
    """Biggest row block whose double-buffered f32 input (lane-padded D) plus resident
    scratch fits ~75% of the per-generation VMEM budget (HBM-roofline sized)."""
    dpad = _round_up(d, 128)
    fixed = (6 * k * dpad + 8 * k * 128) * 4      # cent0 (x2), cent_out (x2), cent/sum scratch, norms/counts
    per_row = 2 * dpad * 4 + 2 * 8 * 4            # double-buffered feature rows + (1,bn) i32 out block
    bn = (int(budget * 0.75) - fixed) // per_row
    bn = max(128, min(bn, 64 * 1024))
    bn = (bn // 128) * 128
    if bn >= n:
        return n, 1
    return bn, int(pl.cdiv(n, bn))


def kmeans_assign(features, init_centroids, max_iters, *, block_n=None):
    """Run `max_iters` Lloyd iterations in one kernel; returns (centroids, assignments)."""
    features = features.astype(jnp.float32)
    init_centroids = init_centroids.astype(jnp.float32)
    n, d = features.shape
    k = init_centroids.shape[0]
    budget = _vmem_budget_bytes()
    if block_n is None:
        bn, n_blocks = _pick_block_n(n, d, k, budget)
    else:
        bn = min(int(block_n), n)
        if bn < n:
            bn = max(128, (bn // 128) * 128)      # lane-dense assignment blocks need 128|bn
        n_blocks = int(pl.cdiv(n, bn))
    fn = _build_kmeans(n, d, k, bn, n_blocks, max_iters, budget)
    centroids, assign = fn(features, init_centroids)
    return centroids, assign[0, :n]


class ClusterAssignment:
    """JAX/Pallas port of k-means cluster assignment (stateful centroids)."""

    def __init__(self, num_classes, feature_dim, max_iterations=10, seed=0):
        self.num_classes = num_classes
        self.feature_dim = feature_dim
        self.max_iterations = max_iterations
        self.centroids = None
        self._key = jax.random.PRNGKey(seed)

    def update_clusters(self, features):
        features = lax.stop_gradient(features).astype(jnp.float32)
        n = features.shape[0]
        if self.centroids is None:
            self._key, sub = jax.random.split(self._key)
            perm = jax.random.permutation(sub, n)[: self.num_classes]
            self.centroids = features[perm]
        # TODO(synk): reference early-breaks on torch.allclose(centroids); fixed iteration
        # count here (numerically equivalent once converged, centroids stop moving).
        centroids, assignments = kmeans_assign(features, self.centroids,
                                               self.max_iterations)
        self.centroids = centroids
        return assignments


# =============================== fused losses ==================================
def _ce_mean_11(logits, labels):
    """mean cross-entropy over the batch; logits [B, C] f32, labels [B, 1] int32 -> [1, 1]."""
    b, c = logits.shape
    m = jnp.max(logits, axis=-1, keepdims=True)
    s = logits - m
    lse = jnp.log(jnp.sum(jnp.exp(s), axis=-1, keepdims=True))
    logp = s - lse
    col = lax.broadcasted_iota(jnp.int32, (b, c), 1)
    onehot = (col == labels).astype(jnp.float32)
    nll = -jnp.sum(onehot * logp, axis=-1, keepdims=True)            # [B, 1]
    return jnp.sum(nll, axis=0, keepdims=True) * (1.0 / b)           # [1, 1]


def _sym_kl_mean_11(x1, x2):
    """0.5*(KL(p2||p1)+KL(p1||p2)) with batchmean reduction -> [1, 1]."""
    def lsm(x):
        m = jnp.max(x, axis=-1, keepdims=True)
        s = x - m
        e = jnp.exp(s)
        z = jnp.sum(e, axis=-1, keepdims=True)
        return s - jnp.log(z), e / z                                 # reuse exp
    lp1, p1 = lsm(x1)
    lp2, p2 = lsm(x2)
    b = x1.shape[0]
    sym = jnp.sum((p2 - p1) * (lp2 - lp1), axis=-1, keepdims=True)   # kl12 + kl21
    return 0.5 * jnp.sum(sym, axis=0, keepdims=True) * (1.0 / b)


def _fused_loss_kernel(*refs, has_cluster, has_cons, inv_temp):
    out_ref = refs[-1]
    rs = refs[:-1]
    i = 0
    sup_logits = rs[i][...].astype(jnp.float32); i += 1
    sup_labels = rs[i][...]; i += 1
    sup = _ce_mean_11(sup_logits, sup_labels)

    if has_cluster:
        clu_logits = rs[i][...].astype(jnp.float32); i += 1
        clu_labels = rs[i][...]; i += 1
        clu = _ce_mean_11(clu_logits, clu_labels)
    else:
        clu = jnp.zeros((1, 1), jnp.float32)

    if has_cons:
        x1 = rs[i][...].astype(jnp.float32) * inv_temp; i += 1
        x2 = rs[i][...].astype(jnp.float32) * inv_temp; i += 1
        cons = _sym_kl_mean_11(x1, x2)
    else:
        cons = jnp.zeros((1, 1), jnp.float32)

    lane = lax.broadcasted_iota(jnp.int32, (1, 3), 1)
    out_ref[...] = (jnp.where(lane == 0, sup, 0.0)
                    + jnp.where(lane == 1, clu, 0.0)
                    + jnp.where(lane == 2, cons, 0.0))


@functools.lru_cache(maxsize=None)
def _build_fused_loss(has_cluster, has_cons, inv_temp, vmem_limit):
    # TODO(synk): at very large B*C this should be row-blocked with a grid over B;
    # for typical logits sizes the whole-tensor reduction fits well under the limit.
    kern = functools.partial(_fused_loss_kernel, has_cluster=has_cluster,
                             has_cons=has_cons, inv_temp=inv_temp)
    n_in = 2 + (2 if has_cluster else 0) + (2 if has_cons else 0)
    pc = pl.pallas_call(
        kern,
        out_shape=jax.ShapeDtypeStruct((1, 3), jnp.float32),
        in_specs=[_VMEM_SPEC] * n_in,
        out_specs=_VMEM_SPEC,
        compiler_params=pltpu.CompilerParams(vmem_limit_bytes=vmem_limit),
    )
    return jax.jit(pc)


# ============================= SemiSupervisedLoss ===============================
class SemiSupervisedLoss:
    def __init__(self, num_classes, feature_dim, lambda_cluster=1.0,
                 cluster_rampup_epochs=0, cluster_update_freq=10, cluster_all=True,
                 lambda_consistency=1.0, temperature=0.5):
        self.num_classes = num_classes
        self.lambda_cluster = lambda_cluster
        self.cluster_rampup_epochs = cluster_rampup_epochs
        self.cluster_update_freq = cluster_update_freq
        self.cluster_all = cluster_all
        self.lambda_consistency = lambda_consistency
        self.temperature = temperature
        self.cluster_assigner = ClusterAssignment(num_classes, feature_dim)
        # TODO(synk): TensorBoard SummaryWriter / logger NaN warnings have no Pallas
        # equivalent; omitted.

    def get_cluster_scale(self, epoch):
        if epoch >= self.cluster_rampup_epochs:
            return 1.0
        return float(1 - math.cos(math.pi * epoch / self.cluster_rampup_epochs)) / 2.0

    def __call__(self, features_labeled, logits_labeled, labels, epoch, batch_idx,
                 features_unlabeled=None, logits_unlabeled=None,
                 logits_aug1=None, logits_aug2=None):
        if batch_idx % self.cluster_update_freq == 0:
            if self.cluster_all:
                all_features = jnp.concatenate(
                    [lax.stop_gradient(features_labeled),
                     lax.stop_gradient(features_unlabeled)], axis=0)
                assignments = self.cluster_assigner.update_clusters(all_features)
                cluster_assignments = assignments[features_labeled.shape[0]:]
            else:
                cluster_assignments = self.cluster_assigner.update_clusters(
                    lax.stop_gradient(features_unlabeled))
        else:
            cluster_assignments = None

        has_cluster = (logits_unlabeled is not None
                       and cluster_assignments is not None)
        has_cons = (logits_aug1 is not None and logits_aug2 is not None)

        args = [logits_labeled, labels.astype(jnp.int32).reshape(-1, 1)]
        if has_cluster:
            min_b = min(logits_unlabeled.shape[0], cluster_assignments.shape[0])
            args += [logits_unlabeled[:min_b],
                     cluster_assignments[:min_b].astype(jnp.int32).reshape(-1, 1)]
        if has_cons:
            args += [logits_aug1, logits_aug2]

        fn = _build_fused_loss(has_cluster, has_cons, 1.0 / float(self.temperature),
                               _vmem_budget_bytes())
        losses = fn(*args)                                 # [1, 3] = [sup, clu, cons]

        total_loss = losses[0, 0]
        if has_cluster:
            cluster_scale = self.get_cluster_scale(epoch)
            total_loss = total_loss + self.lambda_cluster * cluster_scale * losses[0, 1]
        if has_cons:
            total_loss = total_loss + self.lambda_consistency * losses[0, 2]

        # single device->host sync for the (Python float) loss dict
        host = jax.device_get(losses)
        loss_dict = {"supervised": float(host[0, 0])}
        if has_cluster:
            loss_dict["clustering"] = float(host[0, 1])
        if has_cons:
            loss_dict["consistency"] = float(host[0, 2])
        return total_loss, loss_dict


# ----------------------------------- main --------------------------------------
if __name__ == "__main__":
    num_classes = 4
    feature_dim = 32
    B_lab = 8
    B_unlab = 8

    key = jax.random.PRNGKey(0)
    k1, k2, k3, k4, k5, k6, k7 = jax.random.split(key, 7)

    features_labeled = jax.random.normal(k1, (B_lab, feature_dim), jnp.float32)
    features_unlabeled = jax.random.normal(k2, (B_unlab, feature_dim), jnp.float32)
    logits_labeled = jax.random.normal(k3, (B_lab, num_classes), jnp.float32)
    logits_unlabeled = jax.random.normal(k4, (B_unlab, num_classes), jnp.float32)
    logits_aug1 = jax.random.normal(k5, (B_unlab, num_classes), jnp.float32)
    logits_aug2 = jax.random.normal(k6, (B_unlab, num_classes), jnp.float32)
    labels = jax.random.randint(k7, (B_lab,), 0, num_classes, jnp.int32)

    loss_fn = SemiSupervisedLoss(num_classes=num_classes, feature_dim=feature_dim,
                                 lambda_cluster=1.0, cluster_rampup_epochs=0,
                                 cluster_update_freq=10, cluster_all=True,
                                 lambda_consistency=1.0, temperature=0.5)

    total_loss, loss_dict = loss_fn(
        features_labeled, logits_labeled, labels, epoch=1, batch_idx=0,
        features_unlabeled=features_unlabeled, logits_unlabeled=logits_unlabeled,
        logits_aug1=logits_aug1, logits_aug2=logits_aug2)

    jax.block_until_ready(total_loss)
    print("KERNEL_OK")
</pallas_src>

<mosaic_0001>
module attributes {stable_mosaic.version = 11 : i64} {
  func.func @_kmeans_kernel(%arg0: i32, %arg1: i32, %arg2: memref<16x32xf32, #tpu.memory_space<vmem>>, %arg3: memref<4x32xf32, #tpu.memory_space<vmem>>, %arg4: memref<4x32xf32, #tpu.memory_space<vmem>>, %arg5: memref<1x16xi32, #tpu.memory_space<vmem>>, %arg6: memref<4x32xf32, #tpu.memory_space<vmem>>, %arg7: memref<4x1xf32, #tpu.memory_space<vmem>>, %arg8: memref<4x32xf32, #tpu.memory_space<vmem>>, %arg9: memref<4x1xf32, #tpu.memory_space<vmem>>) attributes {dimension_semantics = [#tpu.dimension_semantics<arbitrary>, #tpu.dimension_semantics<arbitrary>], iteration_bounds = array<i64: 10, 1>, scalar_prefetch = 0 : i64, scratch_operands = 4 : i64, tpu.core_type = #tpu.core_type<tc>, window_params = [{transform_indices = @transform_0, window_bounds = array<i64: 16, 32>}, {pipeline_mode = #tpu.pipeline_mode<synchronous>, transform_indices = @transform_1, window_bounds = array<i64: 4, 32>}, {pipeline_mode = #tpu.pipeline_mode<synchronous>, transform_indices = @transform_2, window_bounds = array<i64: 4, 32>}, {transform_indices = @transform_3, window_bounds = array<i64: 1, 16>}]} {
    %c0_i32 = arith.constant 0 : i32
    %0 = arith.cmpi eq, %arg0, %c0_i32 : i32
    %c0_i32_0 = arith.constant 0 : i32
    %1 = arith.cmpi eq, %arg1, %c0_i32_0 : i32
    %2 = arith.andi %0, %1 : i1
    %3 = arith.extui %2 : i1 to i32
    %c0_i32_1 = arith.constant 0 : i32
    %4 = arith.cmpi ne, %3, %c0_i32_1 : i32
    scf.if %4 {
      %c0_28 = arith.constant 0 : index
      %c0_29 = arith.constant 0 : index
      %47 = vector.load %arg3[%c0_28, %c0_29] : memref<4x32xf32, #tpu.memory_space<vmem>>, vector<4x32xf32>
      %cst_30 = arith.constant -2.000000e+00 : f32
      %48 = vector.broadcast %cst_30 : f32 to vector<4x32xf32>
      %49 = arith.mulf %48, %47 : vector<4x32xf32>
      %c0_31 = arith.constant 0 : index
      %c0_32 = arith.constant 0 : index
      %50 = vector.load %arg6[%c0_31, %c0_32] : memref<4x32xf32, #tpu.memory_space<vmem>>, vector<4x32xf32>
      tpu.vector_store %arg6[%c0_31, %c0_32], %49 {strides = array<i32>} : memref<4x32xf32, #tpu.memory_space<vmem>>, vector<4x32xf32>,
      %51 = arith.mulf %47, %47 : vector<4x32xf32>
      %cst_33 = arith.constant dense<0.000000e+00> : vector<4xf32>
      %52 = vector.multi_reduction <add>, %51, %cst_33 [1] : vector<4x32xf32> to vector<4xf32>
      %53 = vector.shape_cast %52 : vector<4xf32> to vector<4x1xf32>
      %c0_34 = arith.constant 0 : index
      %c0_35 = arith.constant 0 : index
      %54 = vector.load %arg7[%c0_34, %c0_35] : memref<4x1xf32, #tpu.memory_space<vmem>>, vector<4x1xf32>
      tpu.vector_store %arg7[%c0_34, %c0_35], %53 {strides = array<i32>} : memref<4x1xf32, #tpu.memory_space<vmem>>, vector<4x1xf32>,
    } else {
    }
    %c0_i32_2 = arith.constant 0 : i32
    %5 = arith.cmpi eq, %arg1, %c0_i32_2 : i32
    %6 = arith.extui %5 : i1 to i32
    %c0_i32_3 = arith.constant 0 : i32
    %7 = arith.cmpi ne, %6, %c0_i32_3 : i32
    scf.if %7 {
      %cst_28 = arith.constant 0.000000e+00 : f32
      %47 = vector.broadcast %cst_28 : f32 to vector<4x32xf32>
      %c0_29 = arith.constant 0 : index
      %c0_30 = arith.constant 0 : index
      %48 = vector.load %arg8[%c0_29, %c0_30] : memref<4x32xf32, #tpu.memory_space<vmem>>, vector<4x32xf32>
      tpu.vector_store %arg8[%c0_29, %c0_30], %47 {strides = array<i32>} : memref<4x32xf32, #tpu.memory_space<vmem>>, vector<4x32xf32>,
      %cst_31 = arith.constant 0.000000e+00 : f32
      %49 = vector.broadcast %cst_31 : f32 to vector<4x1xf32>
      %c0_32 = arith.constant 0 : index
      %c0_33 = arith.constant 0 : index
      %50 = vector.load %arg9[%c0_32, %c0_33] : memref<4x1xf32, #tpu.memory_space<vmem>>, vector<4x1xf32>
      tpu.vector_store %arg9[%c0_32, %c0_33], %49 {strides = array<i32>} : memref<4x1xf32, #tpu.memory_space<vmem>>, vector<4x1xf32>,
    } else {
    }
    %c0 = arith.constant 0 : index
    %c0_4 = arith.constant 0 : index
    %8 = vector.load %arg2[%c0, %c0_4] : memref<16x32xf32, #tpu.memory_space<vmem>>, vector<16x32xf32>
    %c0_5 = arith.constant 0 : index
    %c0_6 = arith.constant 0 : index
    %9 = vector.load %arg7[%c0_5, %c0_6] : memref<4x1xf32, #tpu.memory_space<vmem>>, vector<4x1xf32>
    %c0_7 = arith.constant 0 : index
    %c0_8 = arith.constant 0 : index
    %10 = vector.load %arg6[%c0_7, %c0_8] : memref<4x32xf32, #tpu.memory_space<vmem>>, vector<4x32xf32>
    %cst = arith.constant dense<0.000000e+00> : vector<4x16xf32>
    %11 = tpu.matmul %10, %8, %cst {dimension_numbers = #tpu.dot_dimension_numbers<[1], [1], [0], [0], [0, 0, 1, 0], [], []>} : vector<4x32xf32>, vector<16x32xf32>, vector<4x16xf32> -> vector<4x16xf32>
    %12 = vector.broadcast %9 : vector<4x1xf32> to vector<4x16xf32>
    %13 = arith.addf %12, %11 : vector<4x16xf32>
    %cst_9 = arith.constant dense<0x7F800000> : vector<16xf32>
    %14 = vector.multi_reduction <minimumf>, %13, %cst_9 [0] : vector<4x16xf32> to vector<16xf32>
    %15 = vector.shape_cast %14 : vector<16xf32> to vector<1x16xf32>
    %16 = tpu.iota {dimensions = array<i32: 0>} : vector<4x16xi32>
    %17 = vector.broadcast %15 : vector<1x16xf32> to vector<4x16xf32>
    %18 = arith.cmpf oeq, %13, %17 : vector<4x16xf32>
    %19 = arith.sitofp %16 : vector<4x16xi32> to vector<4x16xf32>
    %cst_10 = arith.constant 4.000000e+00 : f32
    %20 = vector.broadcast %cst_10 : f32 to vector<4x16xf32>
    %21 = arith.select %18, %19, %20 : vector<4x16xi1>, vector<4x16xf32>
    %cst_11 = arith.constant dense<0x7F800000> : vector<16xf32>
    %22 = vector.multi_reduction <minimumf>, %21, %cst_11 [0] : vector<4x16xf32> to vector<16xf32>
    %23 = vector.shape_cast %22 : vector<16xf32> to vector<1x16xf32>
    %24 = arith.fptosi %23 : vector<1x16xf32> to vector<1x16xi32>
    %25 = vector.broadcast %24 : vector<1x16xi32> to vector<4x16xi32>
    %26 = arith.cmpi eq, %16, %25 : vector<4x16xi32>
    %27 = arith.extui %26 : vector<4x16xi1> to vector<4x16xi32>
    %28 = arith.sitofp %27 : vector<4x16xi32> to vector<4x16xf32>
    %c0_12 = arith.constant 0 : index
    %c0_13 = arith.constant 0 : index
    %29 = vector.load %arg8[%c0_12, %c0_13] : memref<4x32xf32, #tpu.memory_space<vmem>>, vector<4x32xf32>
    %cst_14 = arith.constant dense<0.000000e+00> : vector<4x32xf32>
    %30 = tpu.matmul %28, %8, %cst_14 {dimension_numbers = #tpu.dot_dimension_numbers<[1], [0], [0], [1], [0, 0, 1, 1], [], []>} : vector<4x16xf32>, vector<16x32xf32>, vector<4x32xf32> -> vector<4x32xf32>
    %31 = arith.addf %29, %30 : vector<4x32xf32>
    %c0_15 = arith.constant 0 : index
    %c0_16 = arith.constant 0 : index
    %32 = vector.load %arg8[%c0_15, %c0_16] : memref<4x32xf32, #tpu.memory_space<vmem>>, vector<4x32xf32>
    tpu.vector_store %arg8[%c0_15, %c0_16], %31 {strides = array<i32>} : memref<4x32xf32, #tpu.memory_space<vmem>>, vector<4x32xf32>,
    %c0_17 = arith.constant 0 : index
    %c0_18 = arith.constant 0 : index
    %33 = vector.load %arg9[%c0_17, %c0_18] : memref<4x1xf32, #tpu.memory_space<vmem>>, vector<4x1xf32>
    %cst_19 = arith.constant dense<0.000000e+00> : vector<4xf32>
    %34 = vector.multi_reduction <add>, %28, %cst_19 [1] : vector<4x16xf32> to vector<4xf32>
    %35 = vector.shape_cast %34 : vector<4xf32> to vector<4x1xf32>
    %36 = arith.addf %33, %35 : vector<4x1xf32>
    %c0_20 = arith.constant 0 : index
    %c0_21 = arith.constant 0 : index
    %37 = vector.load %arg9[%c0_20, %c0_21] : memref<4x1xf32, #tpu.memory_space<vmem>>, vector<4x1xf32>
    tpu.vector_store %arg9[%c0_20, %c0_21], %36 {strides = array<i32>} : memref<4x1xf32, #tpu.memory_space<vmem>>, vector<4x1xf32>,
    %c0_22 = arith.constant 0 : index
    %c0_23 = arith.constant 0 : index
    %38 = vector.load %arg5[%c0_22, %c0_23] : memref<1x16xi32, #tpu.memory_space<vmem>>, vector<1x16xi32>
    tpu.vector_store %arg5[%c0_22, %c0_23], %24 {strides = array<i32>} : memref<1x16xi32, #tpu.memory_space<vmem>>, vector<1x16xi32>,
    %c0_i32_24 = arith.constant 0 : i32
    %39 = arith.cmpi eq, %arg1, %c0_i32_24 : i32
    %40 = arith.extui %39 : i1 to i32
    %c0_i32_25 = arith.constant 0 : i32
    %41 = arith.cmpi ne, %40, %c0_i32_25 : i32
    scf.if %41 {
      %c0_28 = arith.constant 0 : index
      %c0_29 = arith.constant 0 : index
      %47 = vector.load %arg6[%c0_28, %c0_29] : memref<4x32xf32, #tpu.memory_space<vmem>>, vector<4x32xf32>
      %cst_30 = arith.constant -5.000000e-01 : f32
      %48 = vector.broadcast %cst_30 : f32 to vector<4x32xf32>
      %49 = arith.mulf %47, %48 : vector<4x32xf32>
      %c0_31 = arith.constant 0 : index
      %c0_32 = arith.constant 0 : index
      %50 = vector.load %arg9[%c0_31, %c0_32] : memref<4x1xf32, #tpu.memory_space<vmem>>, vector<4x1xf32>
      %cst_33 = arith.constant 0.000000e+00 : f32
      %51 = vector.broadcast %cst_33 : f32 to vector<4x1xf32>
      %52 = arith.cmpf ogt, %50, %51 : vector<4x1xf32>
      %c0_34 = arith.constant 0 : index
      %c0_35 = arith.constant 0 : index
      %53 = vector.load %arg8[%c0_34, %c0_35] : memref<4x32xf32, #tpu.memory_space<vmem>>, vector<4x32xf32>
      %cst_36 = arith.constant 1.000000e+00 : f32
      %54 = vector.broadcast %cst_36 : f32 to vector<4x1xf32>
      %55 = arith.maximumf %50, %54 : vector<4x1xf32>
      %56 = vector.broadcast %55 : vector<4x1xf32> to vector<4x32xf32>
      %57 = arith.divf %53, %56 : vector<4x32xf32>
      %58 = vector.shape_cast %52 : vector<4x1xi1> to vector<4x1xi1>
      %59 = vector.broadcast %58 : vector<4x1xi1> to vector<4x32xi1>
      %60 = arith.select %59, %57, %49 : vector<4x32xi1>, vector<4x32xf32>
      %cst_37 = arith.constant -2.000000e+00 : f32
      %61 = vector.broadcast %cst_37 : f32 to vector<4x32xf32>
      %62 = arith.mulf %61, %60 : vector<4x32xf32>
      %c0_38 = arith.constant 0 : index
      %c0_39 = arith.constant 0 : index
      %63 = vector.load %arg6[%c0_38, %c0_39] : memref<4x32xf32, #tpu.memory_space<vmem>>, vector<4x32xf32>
      tpu.vector_store %arg6[%c0_38, %c0_39], %62 {strides = array<i32>} : memref<4x32xf32, #tpu.memory_space<vmem>>, vector<4x32xf32>,
      %64 = arith.mulf %60, %60 : vector<4x32xf32>
      %cst_40 = arith.constant dense<0.000000e+00> : vector<4xf32>
      %65 = vector.multi_reduction <add>, %64, %cst_40 [1] : vector<4x32xf32> to vector<4xf32>
      %66 = vector.shape_cast %65 : vector<4xf32> to vector<4x1xf32>
      %c0_41 = arith.constant 0 : index
      %c0_42 = arith.constant 0 : index
      %67 = vector.load %arg7[%c0_41, %c0_42] : memref<4x1xf32, #tpu.memory_space<vmem>>, vector<4x1xf32>
      tpu.vector_store %arg7[%c0_41, %c0_42], %66 {strides = array<i32>} : memref<4x1xf32, #tpu.memory_space<vmem>>, vector<4x1xf32>,
    } else {
    }
    %c9_i32 = arith.constant 9 : i32
    %42 = arith.cmpi eq, %arg0, %c9_i32 : i32
    %c0_i32_26 = arith.constant 0 : i32
    %43 = arith.cmpi eq, %arg1, %c0_i32_26 : i32
    %44 = arith.andi %42, %43 : i1
    %45 = arith.extui %44 : i1 to i32
    %c0_i32_27 = arith.constant 0 : i32
    %46 = arith.cmpi ne, %45, %c0_i32_27 : i32
    scf.if %46 {
      %c0_28 = arith.constant 0 : index
      %c0_29 = arith.constant 0 : index
      %47 = vector.load %arg6[%c0_28, %c0_29] : memref<4x32xf32, #tpu.memory_space<vmem>>, vector<4x32xf32>
      %cst_30 = arith.constant -5.000000e-01 : f32
      %48 = vector.broadcast %cst_30 : f32 to vector<4x32xf32>
      %49 = arith.mulf %47, %48 : vector<4x32xf32>
      %c0_31 = arith.constant 0 : index
      %c0_32 = arith.constant 0 : index
      %50 = vector.load %arg4[%c0_31, %c0_32] : memref<4x32xf32, #tpu.memory_space<vmem>>, vector<4x32xf32>
      tpu.vector_store %arg4[%c0_31, %c0_32], %49 {strides = array<i32>} : memref<4x32xf32, #tpu.memory_space<vmem>>, vector<4x32xf32>,
    } else {
    }
    return
  }
  func.func @transform_0(%arg0: i32, %arg1: i32) -> (i32, i32) {
    %c0_i32 = arith.constant 0 : i32
    %c0_i32_0 = arith.constant 0 : i32
    return %arg1, %c0_i32 : i32, i32
  }
  func.func @transform_1(%arg0: i32, %arg1: i32) -> (i32, i32) {
    %c0_i32 = arith.constant 0 : i32
    %c0_i32_0 = arith.constant 0 : i32
    %c0_i32_1 = arith.constant 0 : i32
    return %c0_i32, %c0_i32_0 : i32, i32
  }
  func.func @transform_2(%arg0: i32, %arg1: i32) -> (i32, i32) {
    %c0_i32 = arith.constant 0 : i32
    %c0_i32_0 = arith.constant 0 : i32
    %c0_i32_1 = arith.constant 0 : i32
    return %c0_i32, %c0_i32_0 : i32, i32
  }
  func.func @transform_3(%arg0: i32, %arg1: i32) -> (i32, i32) {
    %c0_i32 = arith.constant 0 : i32
    %c0_i32_0 = arith.constant 0 : i32
    return %c0_i32, %arg1 : i32, i32
  }
}

</mosaic_0001>

<llo_original>
// kernel: tpu_custom_call.1
$region0: #{tpu_custom_call.1}
  #allocation0 [shape = 'u32[]', space=smem, size = 0x4, offset = 0x4, fixed_abs, tag = 'smem constant byte address 0x4 - core index']
  #allocation1 [shape = 'u32[144,128]{1,0:T(1,128)}', space=vmem, size = 0x12000, scoped, tag = 'internal scratch']
  #allocation2 [shape = 'f32[4,32]{1,0:T(4,128)}', space=vmem, size = 0x800, scoped, tag = 'scratch operand']
  #allocation3 [shape = 'f32[4,1]{1,0:T(4,128)}', space=vmem, size = 0x800, scoped, tag = 'scratch operand']
  #allocation4 [shape = 'f32[4,32]{1,0:T(4,128)}', space=vmem, size = 0x800, scoped, tag = 'scratch operand']
  #allocation5 [shape = 'f32[4,1]{1,0:T(4,128)}', space=vmem, size = 0x800, scoped, tag = 'scratch operand']
  %s0 = inlined_call_operand.hbm [shape: f32[16,32], index: 0, kind: input, shape index: {}]
  %s1 = inlined_call_operand.hbm [shape: f32[4,32], index: 1, kind: input, shape index: {}]
  %s2 = inlined_call_operand.hbm [shape: f32[4,32], index: 2, kind: output, shape index: {0}]
  %s3 = inlined_call_operand.hbm [shape: s32[1,16], index: 3, kind: output, shape index: {1}]
  %4 = xla_tuple %s2, %s3
  %s5 = sld [smem:[#allocation0]]
  $region73: #{tpu_custom_call.1} parent=0
    _
  %s7 = ssub.s32 1, %s5
  %s8 = scalar_select 0, %s7, %s5
  $region1: #{tpu_custom_call.1} parent=0
    #allocation6 [shape = 'u8[8192]{0}', space=vmem, size = 0x2000, scoped, tag = 'input window, operand 0, single buffered']
    #allocation7 [shape = 's32[2]{0}', space=sflag, size = 0x8, scoped, tag = 'scoped memory for tpu_custom_call.1']
    #allocation8 [shape = 's32[2]{0}', space=sflag, size = 0x8, scoped, tag = 'scoped memory for tpu_custom_call.1']
    #allocation9 [shape = 'u8[2048]{0}', space=vmem, size = 0x800, scoped, tag = 'input window, operand 1, single buffered']
    #allocation10 [shape = 's32[1]{0}', space=sflag, size = 0x4, scoped, tag = 'scoped memory for tpu_custom_call.1']
    #allocation11 [shape = 'u8[2048]{0}', space=vmem, size = 0x800, scoped, tag = 'output window, operand 0, single buffered']
    #allocation12 [shape = 'u8[512]{0}', space=vmem, size = 0x400, scoped, tag = 'output window, operand 1, single buffered']
    #allocation13 [shape = 's32[1]{0}', space=sflag, size = 0x4, scoped, tag = 'scoped memory for tpu_custom_call.1']
    %9 = vsyncpa [#allocation7], 0
    %10 = vsyncpa [#allocation10], 0
    %11 = vsyncpa [#allocation8], 0
    %12 = vsyncpa [#allocation13], 0
    loop: start=0, step=1, limit=12
    $region2: #{tpu_custom_call.1} parent=1 // loop_pre_header
      _
    $region3: #{tpu_custom_call.1} parent=1 // loop_header
      %s14 = sphi 0, %s18
      %p15 = scmp.ge.s32.totalorder %s14, 12
      %s21 = sphi 0, %s33
      %s22 = sphi 0, %s29
      %s23 = sphi 0, %s21
      %s24 = sphi 0, %s22
      %s25 = sphi 0, %s23
      %s26 = sphi 0, %s24
      %s36 = sphi 0, %s38
      %s39 = sphi 0, %s36
      %s40 = sphi 0, %s39
      %s56 = sphi 0, %s40
      %s60 = sphi 0, %s60
      %s62 = sphi 0, %s60
      %s63 = sphi 0, %s62
      %s77 = sphi 0, %s63
      %s81 = sphi 0, %s81
      %s83 = sphi 0, %s81
      %s84 = sphi 0, %s83
      %s98 = sphi 0, %s84
      %s104 = sphi 0, %s106
      %s107 = sphi 0, %s104
      %s108 = sphi 0, %s107
      %s124 = sphi 0, %s108
    $region4: #{tpu_custom_call.1} parent=1 // loop_header_branch
      %17 = sbr.rel (%p15) target = $region8
    $region5: #{tpu_custom_call.1} parent=1 // loop_body
      %s19 = ssub.s32 %s14, 1
      %s20 = ssub.s32 %s14, 2
      %s27 = sadd.s32 1, %s22
      %p28 = scmp.ge.s32.totalorder %s27, 1
      %s29 = scalar_select %p28, 0, %s27
      %s30 = sadd.s32 1, %s21
      %s31 = scalar_select %p28, %s30, %s21
      %p32 = scmp.ge.s32.totalorder %s31, 10
      %s33 = scalar_select %p32, 0, %s31
      %s34 = ssub.s32 %s22, %s29
      %p35 = scmp.eq.s32.totalorder %s34, 0
      %s37 = sadd.s32 %s36, 1
      %s38 = scalar_select %p35, %s36, %s37
      %p41 = pneg %p35
      %p42 = scmp.eq.s32.totalorder %s14, 9
      %p43 = por %p41, %p42
      %p44 = scmp.ne.s32.totalorder %s36, %s39
      %p45 = scmp.eq.s32.totalorder %s14, 0
      %p46 = por %p44, %p45
      %p47 = scmp.ne.s32.totalorder %s36, %s39
      %p48 = scmp.eq.s32.totalorder %s19, 9
      %p49 = por %p47, %p48
      %p50 = scmp.ne.s32.totalorder %s39, %s40
      %p51 = scmp.eq.s32.totalorder %s19, 0
      %p52 = por %p50, %p51
      %p53 = scmp.ne.s32.totalorder %s39, %s40
      %p54 = scmp.eq.s32.totalorder %s20, 9
      %p55 = por %p53, %p54
      %p57 = scmp.ne.s32.totalorder %s40, %s56
      %p58 = scmp.eq.s32.totalorder %s20, 0
      %p59 = por %p57, %p58
      %s61 = sadd.s32 %s60, 1
      %p64 = scmp.eq.s32.totalorder %s14, 9
      %p65 = scmp.ne.s32.totalorder %s60, %s62
      %p66 = scmp.eq.s32.totalorder %s14, 0
      %p67 = por %p65, %p66
      %p68 = scmp.ne.s32.totalorder %s60, %s62
      %p69 = scmp.eq.s32.totalorder %s19, 9
      %p70 = por %p68, %p69
      %p71 = scmp.ne.s32.totalorder %s62, %s63
      %p72 = scmp.eq.s32.totalorder %s19, 0
      %p73 = por %p71, %p72
      %p74 = scmp.ne.s32.totalorder %s62, %s63
      %p75 = scmp.eq.s32.totalorder %s20, 9
      %p76 = por %p74, %p75
      %p78 = scmp.ne.s32.totalorder %s63, %s77
      %p79 = scmp.eq.s32.totalorder %s20, 0
      %p80 = por %p78, %p79
      %s82 = sadd.s32 %s81, 1
      %p85 = scmp.eq.s32.totalorder %s14, 9
      %p86 = scmp.ne.s32.totalorder %s81, %s83
      %p87 = scmp.eq.s32.totalorder %s14, 0
      %p88 = por %p86, %p87
      %p89 = scmp.ne.s32.totalorder %s81, %s83
      %p90 = scmp.eq.s32.totalorder %s19, 9
      %p91 = por %p89, %p90
      %p92 = scmp.ne.s32.totalorder %s83, %s84
      %p93 = scmp.eq.s32.totalorder %s19, 0
      %p94 = por %p92, %p93
      %p95 = scmp.ne.s32.totalorder %s83, %s84
      %p96 = scmp.eq.s32.totalorder %s20, 9
      %p97 = por %p95, %p96
      %p99 = scmp.ne.s32.totalorder %s84, %s98
      %p100 = scmp.eq.s32.totalorder %s20, 0
      %p101 = por %p99, %p100
      %s102 = ssub.s32 %s22, %s29
      %p103 = scmp.eq.s32.totalorder %s102, 0
      %s105 = sadd.s32 %s104, 1
      %s106 = scalar_select %p103, %s104, %s105
      %p109 = pneg %p103
      %p110 = scmp.eq.s32.totalorder %s14, 9
      %p111 = por %p109, %p110
      %p112 = scmp.ne.s32.totalorder %s104, %s107
      %p113 = scmp.eq.s32.totalorder %s14, 0
      %p114 = por %p112, %p113
      %p115 = scmp.ne.s32.totalorder %s104, %s107
      %p116 = scmp.eq.s32.totalorder %s19, 9
      %p117 = por %p115, %p116
      %p118 = scmp.ne.s32.totalorder %s107, %s108
      %p119 = scmp.eq.s32.totalorder %s19, 0
      %p120 = por %p118, %p119
      %p121 = scmp.ne.s32.totalorder %s107, %s108
      %p122 = scmp.eq.s32.totalorder %s20, 9
      %p123 = por %p121, %p122
      %p125 = scmp.ne.s32.totalorder %s108, %s124
      %p126 = scmp.eq.s32.totalorder %s20, 0
      %p127 = por %p125, %p126
      %p128 = scmp.le.s32.totalorder 1, %s14
      %p129 = scmp.lt.s32.totalorder %s14, 11
      %p130 = pnand %p128, %p129
      %p131 = pneg %p130
      // Predicated region
      $region9: #{tpu_custom_call.1} parent=5 // pred_check
        _
      $region10: #{tpu_custom_call.1} parent=5 // pred_check_branch
        %133 = sbr.rel (%p130) target = $region12
      $region11: #{tpu_custom_call.1} parent=5 // pred_region
        %s134 = ssub.s32 %s14, 1
        // Predicated region
        $region13: #{tpu_custom_call.1} parent=11 // pred_check
          %p135 = pneg %p52
        $region14: #{tpu_custom_call.1} parent=11 // pred_check_branch
          %137 = sbr.rel (%p135) target = $region16
        $region15: #{tpu_custom_call.1} parent=11 // pred_region
          %s138 = smul.u32 2, %s24
          %s140 = ssub.s32 256, 256
          %141 = vsyncadd [#allocation7], %s140
          %s142 = smul.addr %s138, 128
          %s143 = scalar_lea.hbm %s0, %s142
          %s144 = sshll.u32 [#allocation6], 4
          %s145 = int_to_ptr.vmem [resolvable:$true] %s144
          %150 = dma.hbm_to_vmem [thread:$0]  %s143, 256, %s145, [#allocation7], 128, 128, 8
        $region16: #{tpu_custom_call.1} parent=11 // pred_fallthru
          _
        // Predicated region
        $region17: #{tpu_custom_call.1} parent=11 // pred_check
          %p151 = pneg %p73
        $region18: #{tpu_custom_call.1} parent=11 // pred_check_branch
          %153 = sbr.rel (%p151) target = $region20
        $region19: #{tpu_custom_call.1} parent=11 // pred_region
          %s155 = ssub.s32 64, 64
          %156 = vsyncadd [#allocation10], %s155
          %s158 = sshll.u32 [#allocation9], 4
          %s159 = int_to_ptr.vmem [resolvable:$true] %s158
          %161 = dma.hbm_to_vmem [thread:$0]  %s1, 64, %s159, [#allocation10]
        $region20: #{tpu_custom_call.1} parent=11 // pred_fallthru
          _
      $region12: #{tpu_custom_call.1} parent=5 // pred_fallthru
        _
      %p162 = scmp.lt.s32.totalorder %s14, 10
      // Predicated region
      $region21: #{tpu_custom_call.1} parent=5 // pred_check
        %p163 = pneg %p162
      $region22: #{tpu_custom_call.1} parent=5 // pred_check_branch
        %165 = sbr.rel (%p163) target = $region24
      $region23: #{tpu_custom_call.1} parent=5 // pred_region
        _
      $region24: #{tpu_custom_call.1} parent=5 // pred_fallthru
        _
      %p166 = scmp.le.s32.totalorder 1, %s14
      %p167 = scmp.lt.s32.totalorder %s14, 11
      %p168 = pnand %p166, %p167
      %p169 = pneg %p168
      // Predicated region
      $region25: #{tpu_custom_call.1} parent=5 // pred_check
        _
      $region26: #{tpu_custom_call.1} parent=5 // pred_check_branch
        %171 = sbr.rel (%p168) target = $region28
      $region27: #{tpu_custom_call.1} parent=5 // pred_region
        %s172 = ssub.s32 %s14, 1
        // Predicated region
        $region29: #{tpu_custom_call.1} parent=27 // pred_check
          %p173 = pneg %p52
        $region30: #{tpu_custom_call.1} parent=27 // pred_check_branch
          %175 = sbr.rel (%p173) target = $region32
        $region31: #{tpu_custom_call.1} parent=27 // pred_region
          %176 = dma.done [#allocation7], 256
        $region32: #{tpu_custom_call.1} parent=27 // pred_fallthru
          _
        // Predicated region
        $region33: #{tpu_custom_call.1} parent=27 // pred_check
          %p177 = pneg %p73
        $region34: #{tpu_custom_call.1} parent=27 // pred_check_branch
          %179 = sbr.rel (%p177) target = $region36
        $region35: #{tpu_custom_call.1} parent=27 // pred_region
          %180 = dma.done [#allocation10], 64
        $region36: #{tpu_custom_call.1} parent=27 // pred_fallthru
          _
        %p181 = pneg %p52
        %p182 = pneg %p49
        %p183 = pneg %p73
        %p184 = pneg %p70
        %p185 = pneg %p94
        %p186 = pneg %p91
        %p187 = pneg %p120
        %p188 = pneg %p117
        %s189 = smul.u32 2, %s24
        %p190 = scmp.eq.s32.totalorder %s23, 0
        %p191 = scmp.eq.s32.totalorder %s24, 0
        %p192 = pnand %p190, %p191
        %p193 = pneg %p192
        // Predicated region
        $region37: #{tpu_custom_call.1} parent=27 // pred_check
          _
        $region38: #{tpu_custom_call.1} parent=27 // pred_check_branch
          %195 = sbr.rel (%p192) target = $region40
        $region39: #{tpu_custom_call.1} parent=27 // pred_region
          %v196 = vld [vmem:[#allocation9] sm:$0xf]
          %v197 = vmul.f32 %v196, -2.0
          %vm198 = vcmask 257024
          %199 = vst.msk [vmem:[#allocation2] sm:$0xf] %vm198, %v197
          %v200 = vmul.f32 %v196, %v196
          %v201 = vsel %vm198, %v200, 0.0
          %202 = vadd.xlane.f32.xlu0 %v201
          %v203 = vpop.xlane.xlu0 %202
          %vm204 = vcmask 3072
          %205 = vst.msk [vmem:[#allocation3] sm:$0xf] %vm204, %v203
        $region40: #{tpu_custom_call.1} parent=27 // pred_fallthru
          _
        // Predicated region
        $region41: #{tpu_custom_call.1} parent=27 // pred_check
          %p206 = pneg %p191
        $region42: #{tpu_custom_call.1} parent=27 // pred_check_branch
          %208 = sbr.rel (%p206) target = $region44
        $region43: #{tpu_custom_call.1} parent=27 // pred_region
          %vm209 = vcmask 257024
          %210 = vst.msk [vmem:[#allocation4] sm:$0xf] %vm209, 0.0
          %vm211 = vcmask 3072
          %212 = vst.msk [vmem:[#allocation5] sm:$0xf] %vm211, 0.0
        $region44: #{tpu_custom_call.1} parent=27 // pred_fallthru
          _
        %v213 = vld [vmem:[#allocation6] sm:$0xff]
        %v214 = vld [vmem:[#allocation6 + $0x8] sm:$0xff]
        %v215 = vld [vmem:[#allocation3] sm:$0xf]
        %v216 = vld [vmem:[#allocation2] sm:$0xf]
        %vm217 = vcmask 261120
        %v219 = vsel %vm217, %v216, 0
        %v222 = vsel %vm217, %v213, 0
        %v225 = vsel %vm217, %v214, 0
        %227 = vmatprep.subr.mxu0 0.0
        %228 = vmatpush1.xpose.msra.mxu0 %v222
        %229 = vmatprep.subr.mxu0 0.0
        %230 = vmatpush1.xpose.msra.mxu0 %v225
        %231 = vmatprep.subr.mxu0 0.0
        %232 = vmatpush1.xpose.msra.mxu0 0.0
        %233 = vmatprep.subr.mxu0 0.0
        %234 = vmatpush1.xpose.msra.mxu0 0.0
        %235 = vmatprep.subr.mxu0 0.0
        %236 = vmatpush1.xpose.msra.mxu0 0.0
        %237 = vmatprep.subr.mxu0 0.0
        %238 = vmatpush1.xpose.msra.mxu0 0.0
        %239 = vmatprep.subr.mxu0 0.0
        %240 = vmatpush1.xpose.msra.mxu0 0.0
        %241 = vmatprep.subr.mxu0 0.0
        %242 = vmatpush1.xpose.msra.mxu0 0.0
        %243 = vmatprep.subr.mxu0 0.0
        %244 = vmatpush1.xpose.msra.mxu0 0.0
        %245 = vmatprep.subr.mxu0 0.0
        %246 = vmatpush1.xpose.msra.mxu0 0.0
        %247 = vmatprep.subr.mxu0 0.0
        %248 = vmatpush1.xpose.msra.mxu0 0.0
        %249 = vmatprep.subr.mxu0 0.0
        %250 = vmatpush1.xpose.msra.mxu0 0.0
        %251 = vmatprep.subr.mxu0 0.0
        %252 = vmatpush1.xpose.msra.mxu0 0.0
        %253 = vmatprep.subr.mxu0 0.0
        %254 = vmatpush1.xpose.msra.mxu0 0.0
        %255 = vmatprep.subr.mxu0 0.0
        %256 = vmatpush1.xpose.msra.mxu0 0.0
        %257 = vmatprep.subr.mxu0 0.0
        %258 = vmatpush1.xpose.msra.mxu0 0.0
        %259 = vmatprep.subr.mxu0 0.0
        %260 = vmatpush1.xpose.msra.mxu0 0.0
        %261 = vmatprep.subr.mxu0 0.0
        %262 = vmatpush1.xpose.msra.mxu0 0.0
        %263 = vmatprep.subr.mxu0 0.0
        %264 = vmatpush1.xpose.msra.mxu0 0.0
        %265 = vmatprep.subr.mxu0 0.0
        %266 = vmatpush1.xpose.msra.mxu0 0.0
        %267 = vmatprep.subr.mxu0 0.0
        %268 = vmatpush1.xpose.msra.mxu0 0.0
        %269 = vmatprep.subr.mxu0 0.0
        %270 = vmatpush1.xpose.msra.mxu0 0.0
        %271 = vmatprep.subr.mxu0 0.0
        %272 = vmatpush1.xpose.msra.mxu0 0.0
        %273 = vmatprep.subr.mxu0 0.0
        %274 = vmatpush1.xpose.msra.mxu0 0.0
        %275 = vmatprep.subr.mxu0 0.0
        %276 = vmatpush1.xpose.msra.mxu0 0.0
        %277 = vmatprep.subr.mxu0 0.0
        %278 = vmatpush1.xpose.msra.mxu0 0.0
        %279 = vmatprep.subr.mxu0 0.0
        %280 = vmatpush1.xpose.msra.mxu0 0.0
        %281 = vmatprep.subr.mxu0 0.0
        %282 = vmatpush1.xpose.msra.mxu0 0.0
        %283 = vmatprep.subr.mxu0 0.0
        %284 = vmatpush1.xpose.msra.mxu0 0.0
        %285 = vmatprep.subr.mxu0 0.0
        %286 = vmatpush1.xpose.msra.mxu0 0.0
        %287 = vmatprep.subr.mxu0 0.0
        %288 = vmatpush1.xpose.msra.mxu0 0.0
        %289 = vmatprep.subr.mxu0 0.0
        %290 = vmatpush1.xpose.msra.mxu0 0.0
        %291 = vmatprep.mubr.f32.mxu0 0.0
        %292 = vmatmul.mubr.f32.gmra.mrb[0].mxu0 %v219
        %v293 = vpop.f32.mrb[0].mxu0
        %v294 = vadd.f32 0.0, %v293
        %v295 = vpop.f32.mrb[0].mxu0
        %296 = vdwg.mxu0
        %298 = vset.pattern.permute.xlu0 0
        %299 = vperm.xlu0 %298, %v215
        %v300 = vpop.permute.xlu0 %299
        %v302 = vadd.f32 %v300, %v294
        %vm303 = vcmask 125952
        %v304 = vsel %vm303, %v302, inf
        %v305 = vrot.slane %v304, 4
        %v306 = vmin.f32 %v304, %v305
        %v307 = vrot.slane %v306, 2
        %v308 = vmin.f32 %v306, %v307
        %v309 = vrot.slane %v308, 1
        %v310 = vmin.f32 %v308, %v309
        %v311 = vlaneseq
        %v312 = vshrl.u32 %v311, 7
        %vm313 = vcmp.eq.f32.partialorder %v302, %v310
        %v314 = vcvt.s32.f32 %v312
        %v315 = vsel %vm313, %v314, 4.0
        %v316 = vsel %vm303, %v315, inf
        %v317 = vrot.slane %v316, 4
        %v318 = vmin.f32 %v316, %v317
        %v319 = vrot.slane %v318, 2
        %v320 = vmin.f32 %v318, %v319
        %v321 = vrot.slane %v320, 1
        %v322 = vmin.f32 %v320, %v321
        %v323 = vcvt.f32.s32.to.zero.pseudo %v322
        %vm324 = vcmp.eq.s32.totalorder %v312, %v323
        %v325 = vsel %vm324, 1, 0
        %v326 = vcvt.s32.f32 %v325
        %v327 = vld [vmem:[#allocation4] sm:$0xf]
        %vm328 = vcmask 130048
        %v330 = vsel %vm328, %v326, 0
        %332 = vmatprep.subr.mxu0 0.0
        %333 = vmatpush1.msra.mxu0 %v213
        %334 = vmatprep.subr.mxu0 0.0
        %335 = vmatpush1.msra.mxu0 %v214
        %336 = vmatprep.subr.mxu0 0.0
        %337 = vmatpush1.msra.mxu0 0.0
        %338 = vmatprep.subr.mxu0 0.0
        %339 = vmatpush1.msra.mxu0 0.0
        %340 = vmatprep.subr.mxu0 0.0
        %341 = vmatpush1.msra.mxu0 0.0
        %342 = vmatprep.subr.mxu0 0.0
        %343 = vmatpush1.msra.mxu0 0.0
        %344 = vmatprep.subr.mxu0 0.0
        %345 = vmatpush1.msra.mxu0 0.0
        %346 = vmatprep.subr.mxu0 0.0
        %347 = vmatpush1.msra.mxu0 0.0
        %348 = vmatprep.subr.mxu0 0.0
        %349 = vmatpush1.msra.mxu0 0.0
        %350 = vmatprep.subr.mxu0 0.0
        %351 = vmatpush1.msra.mxu0 0.0
        %352 = vmatprep.subr.mxu0 0.0
        %353 = vmatpush1.msra.mxu0 0.0
        %354 = vmatprep.subr.mxu0 0.0
        %355 = vmatpush1.msra.mxu0 0.0
        %356 = vmatprep.subr.mxu0 0.0
        %357 = vmatpush1.msra.mxu0 0.0
        %358 = vmatprep.subr.mxu0 0.0
        %359 = vmatpush1.msra.mxu0 0.0
        %360 = vmatprep.subr.mxu0 0.0
        %361 = vmatpush1.msra.mxu0 0.0
        %362 = vmatprep.subr.mxu0 0.0
        %363 = vmatpush1.msra.mxu0 0.0
        %364 = vmatprep.subr.mxu0 0.0
        %365 = vmatpush1.msra.mxu0 0.0
        %366 = vmatprep.subr.mxu0 0.0
        %367 = vmatpush1.msra.mxu0 0.0
        %368 = vmatprep.subr.mxu0 0.0
        %369 = vmatpush1.msra.mxu0 0.0
        %370 = vmatprep.subr.mxu0 0.0
        %371 = vmatpush1.msra.mxu0 0.0
        %372 = vmatprep.subr.mxu0 0.0
        %373 = vmatpush1.msra.mxu0 0.0
        %374 = vmatprep.subr.mxu0 0.0
        %375 = vmatpush1.msra.mxu0 0.0
        %376 = vmatprep.subr.mxu0 0.0
        %377 = vmatpush1.msra.mxu0 0.0
        %378 = vmatprep.subr.mxu0 0.0
        %379 = vmatpush1.msra.mxu0 0.0
        %380 = vmatprep.subr.mxu0 0.0
        %381 = vmatpush1.msra.mxu0 0.0
        %382 = vmatprep.subr.mxu0 0.0
        %383 = vmatpush1.msra.mxu0 0.0
        %384 = vmatprep.subr.mxu0 0.0
        %385 = vmatpush1.msra.mxu0 0.0
        %386 = vmatprep.subr.mxu0 0.0
        %387 = vmatpush1.msra.mxu0 0.0
        %388 = vmatprep.subr.mxu0 0.0
        %389 = vmatpush1.msra.mxu0 0.0
        %390 = vmatprep.subr.mxu0 0.0
        %391 = vmatpush1.msra.mxu0 0.0
        %392 = vmatprep.subr.mxu0 0.0
        %393 = vmatpush1.msra.mxu0 0.0
        %394 = vmatprep.subr.mxu0 0.0
        %395 = vmatpush1.msra.mxu0 0.0
        %396 = vmatprep.mubr.f32.mxu0 0.0
        %397 = vmatmul.mubr.f32.gmra.mrb[0].mxu0 %v330
        %v398 = vpop.f32.mrb[0].mxu0
        %v399 = vadd.f32 0.0, %v398
        %v400 = vpop.f32.mrb[0].mxu0
        %401 = vdwg.mxu0
        %v402 = vadd.f32 %v327, %v399
        %vm403 = vcmask 257024
        %404 = vst.msk [vmem:[#allocation4] sm:$0xf] %vm403, %v402
        %v405 = vld [vmem:[#allocation5] sm:$0xf]
        %v406 = vsel %vm303, %v326, 0.0
        %407 = vadd.xlane.f32.xlu0 %v406
        %v408 = vpop.xlane.xlu0 %407
        %v409 = vadd.f32 %v405, %v408
        %vm410 = vcmask 3072
        %411 = vst.msk [vmem:[#allocation5] sm:$0xf] %vm410, %v409
        %vm412 = vcmask 122880
        %413 = vst.msk [vmem:[#allocation12] sm:$0x1] %vm412, %v323
        // Predicated region
        $region45: #{tpu_custom_call.1} parent=27 // pred_check
          %p414 = pneg %p191
        $region46: #{tpu_custom_call.1} parent=27 // pred_check_branch
          %416 = sbr.rel (%p414) target = $region48
        $region47: #{tpu_custom_call.1} parent=27 // pred_region
          %v417 = vld [vmem:[#allocation2] sm:$0xf]
          %v418 = vmul.f32 %v417, -0.5
          %v419 = vld [vmem:[#allocation5] sm:$0xf]
          %vm420 = vcmp.gt.f32.partialorder %v419, 0.0
          %v421 = vld [vmem:[#allocation4] sm:$0xf]
          %v422 = vmax.f32 %v419, 1.0
          %424 = vset.pattern.permute.xlu0 0
          %425 = vperm.xlu0 %424, %v422
          %v426 = vpop.permute.xlu0 %425
          %v428 = vrcp.pop %v426
          %v429 = vmul.f32 %v421, %v428
          %v430 = vsel %vm420, 1, 0
          %431 = vset.pattern.permute.xlu0 0
          %432 = vperm.xlu0 %431, %v430
          %v433 = vpop.permute.xlu0 %432
          %vm434 = vcmp.eq.s32.totalorder %v433, 1
          %v435 = vsel %vm434, %v429, %v418
          %v436 = vmul.f32 %v435, -2.0
          %437 = vst.msk [vmem:[#allocation2] sm:$0xf] %vm403, %v436
          %v438 = vmul.f32 %v435, %v435
          %v439 = vsel %vm403, %v438, 0.0
          %440 = vadd.xlane.f32.xlu0 %v439
          %v441 = vpop.xlane.xlu0 %440
          %442 = vst.msk [vmem:[#allocation3] sm:$0xf] %vm410, %v441
        $region48: #{tpu_custom_call.1} parent=27 // pred_fallthru
          _
        %p443 = scmp.eq.s32.totalorder %s23, 9
        %p444 = pnand %p443, %p191
        %p445 = pneg %p444
        // Predicated region
        $region49: #{tpu_custom_call.1} parent=27 // pred_check
          _
        $region50: #{tpu_custom_call.1} parent=27 // pred_check_branch
          %447 = sbr.rel (%p444) target = $region52
        $region51: #{tpu_custom_call.1} parent=27 // pred_region
          %v448 = vld [vmem:[#allocation2] sm:$0xf]
          %v449 = vmul.f32 %v448, -0.5
          %450 = vst.msk [vmem:[#allocation11] sm:$0xf] %vm403, %v449
        $region52: #{tpu_custom_call.1} parent=27 // pred_fallthru
          _
        // Predicated region
        $region53: #{tpu_custom_call.1} parent=27 // pred_check
          %p451 = pneg %p91
        $region54: #{tpu_custom_call.1} parent=27 // pred_check_branch
          %453 = sbr.rel (%p451) target = $region56
        $region55: #{tpu_custom_call.1} parent=27 // pred_region
          %s455 = ssub.s32 64, 64
          %456 = vsyncadd [#allocation8], %s455
          %s458 = sshll.u32 [#allocation11], 4
          %s459 = int_to_ptr.vmem [resolvable:$true] %s458
          %461 = dma.vmem_to_hbm [thread:$0]  %s459, 64, %s2, [#allocation8]
        $region56: #{tpu_custom_call.1} parent=27 // pred_fallthru
          _
        // Predicated region
        $region57: #{tpu_custom_call.1} parent=27 // pred_check
          %p462 = pneg %p117
        $region58: #{tpu_custom_call.1} parent=27 // pred_check_branch
          %464 = sbr.rel (%p462) target = $region60
        $region59: #{tpu_custom_call.1} parent=27 // pred_region
          %s466 = ssub.s32 16, 16
          %467 = vsyncadd [#allocation13], %s466
          %s468 = smul.addr %s24, 16
          %s469 = scalar_lea.hbm %s3, %s468
          %s471 = sshll.u32 [#allocation12], 4
          %s472 = int_to_ptr.vmem [resolvable:$true] %s471
          %474 = dma.vmem_to_hbm [thread:$0]  %s472, 16, %s469, [#allocation13]
        $region60: #{tpu_custom_call.1} parent=27 // pred_fallthru
          _
        // Predicated region
        $region61: #{tpu_custom_call.1} parent=27 // pred_check
          %p475 = pneg %p91
        $region62: #{tpu_custom_call.1} parent=27 // pred_check_branch
          %477 = sbr.rel (%p475) target = $region64
        $region63: #{tpu_custom_call.1} parent=27 // pred_region
          %478 = dma.done [#allocation8], 64
        $region64: #{tpu_custom_call.1} parent=27 // pred_fallthru
          _
        // Predicated region
        $region65: #{tpu_custom_call.1} parent=27 // pred_check
          %p479 = pneg %p117
        $region66: #{tpu_custom_call.1} parent=27 // pred_check_branch
          %481 = sbr.rel (%p479) target = $region68
        $region67: #{tpu_custom_call.1} parent=27 // pred_region
          %482 = dma.done [#allocation13], 16
        $region68: #{tpu_custom_call.1} parent=27 // pred_fallthru
          _
      $region28: #{tpu_custom_call.1} parent=5 // pred_fallthru
        _
      %p483 = scmp.le.s32.totalorder 2, %s14
      // Predicated region
      $region69: #{tpu_custom_call.1} parent=5 // pred_check
        %p484 = pneg %p483
      $region70: #{tpu_custom_call.1} parent=5 // pred_check_branch
        %486 = sbr.rel (%p484) target = $region72
      $region71: #{tpu_custom_call.1} parent=5 // pred_region
        %s487 = ssub.s32 %s14, 2
      $region72: #{tpu_custom_call.1} parent=5 // pred_fallthru
        _
    $region6: #{tpu_custom_call.1} parent=1 // loop_footer
      %s18 = sadd.s32 1, %s14
    $region7: #{tpu_custom_call.1} parent=1 // loop_footer_branch
      %13 = sbr.rel target = $region3
    $region8: #{tpu_custom_call.1} parent=1 // loop_exit
      _
    %488 = vsyncpa [#allocation7], 1
    %s489 = scalar_lea.sflag [#allocation7], 1
    %490 = vsyncpa %s489, 1
    %491 = vsyncpa [#allocation10], 1
    %492 = vsyncpa [#allocation8], 1
    %s493 = scalar_lea.sflag [#allocation8], 1
    %494 = vsyncpa %s493, 1
    %495 = vsyncpa [#allocation13], 1

</llo_original>
